<compile_context>
chip_gen: v7x
topology: tpu7x:2x2x1
jax: 0.10.0
libtpu: 0.0.40
codegen_flags: <defaults>
</compile_context>

<pallas_src>
import functools

import jax
import jax.numpy as jnp
from jax.experimental import pallas as pl
from jax.experimental.pallas import tpu as pltpu

LANE = 128
SUBLANE = 8


def _cdiv(a, b):
    return -(-a // b)


def _round_up(a, m):
    return _cdiv(a, m) * m


def _default_vmem_limit_bytes():
    # 96 MiB on v5e/v6e (128 MiB physical), 48 MiB on v7x (64 MiB physical).
    try:
        cap = int(pltpu.get_tpu_info().vmem_capacity_bytes)
    except Exception:
        cap = 64 * 1024 * 1024          # v7x-safe fallback
    return min(cap * 3 // 4, 96 * 1024 * 1024)


def _sum_last2(x):
    # sublane reduction first (keeps full lanes), then lane reduction
    s = jnp.sum(x, axis=-2, keepdims=True)
    return jnp.sum(s, axis=-1, keepdims=True)


# ----------------------------- fused single-pass kernel ----------------------

def _gn_fused_kernel(x_ref, w_ref, b_ref, o_ref, *, inv_count, eps):
    # x_ref/o_ref: (kN, kG, Cg, HW); w_ref/b_ref: (kG, Cg, 1)
    x = x_ref[...].astype(jnp.float32)
    mean = _sum_last2(x) * inv_count                       # (kN, kG, 1, 1)
    xc = x - mean
    var = _sum_last2(xc * xc) * inv_count                  # centered -> stable
    rstd = jax.lax.rsqrt(var + eps)
    w = w_ref[...].astype(jnp.float32)[None]               # (1, kG, Cg, 1)
    b = b_ref[...].astype(jnp.float32)[None]
    o_ref[...] = (xc * rstd * w + b).astype(o_ref.dtype)


# ----------------------------- two-pass kernels ------------------------------

def _gn_stats_kernel(x_ref, mean_ref, rstd_ref, shift_ref, acc1_ref, acc2_ref,
                     *, hw, inv_count, inv_first_count, eps):
    # x_ref: (Cg, t_hw) tile of one (n, g) slab; grid = (N, G, n_hw), r last.
    r = pl.program_id(2)
    cg, t_hw = x_ref.shape
    ragged = (hw % t_hw) != 0                              # static
    x = x_ref[...].astype(jnp.float32)

    if ragged:
        lane = jax.lax.broadcasted_iota(jnp.int32, (cg, t_hw), 1)
        valid = (r * t_hw + lane) < hw

    @pl.when(r == 0)
    def _():
        x0 = jnp.where(valid, x, 0.0) if ragged else x
        # first-tile mean is the shift (Welford-lite) -> good conditioning
        shift_ref[...] = _sum_last2(x0) * inv_first_count
        acc1_ref[...] = jnp.zeros_like(acc1_ref)
        acc2_ref[...] = jnp.zeros_like(acc2_ref)

    shift = shift_ref[...]                                 # (1, 1)
    d = x - shift
    if ragged:
        d = jnp.where(valid, d, 0.0)

    if cg % SUBLANE == 0:
        # layout-preserving split of the sublane axis -> pure VPU adds
        dg = d.reshape(cg // SUBLANE, SUBLANE, t_hw)
        acc1_ref[...] += jnp.sum(dg, axis=0)
        acc2_ref[...] += jnp.sum(dg * dg, axis=0)
    else:
        acc1_ref[0:1, :] += jnp.sum(d, axis=0, keepdims=True)
        acc2_ref[0:1, :] += jnp.sum(d * d, axis=0, keepdims=True)

    @pl.when(r == pl.num_programs(2) - 1)
    def _():
        s1 = _sum_last2(acc1_ref[...])                     # (1, 1)
        s2 = _sum_last2(acc2_ref[...])
        dmean = s1 * inv_count
        mean = shift_ref[...] + dmean
        var = jnp.maximum(s2 * inv_count - dmean * dmean, 0.0)
        rstd = jax.lax.rsqrt(var + eps)
        mean_ref[...] = jnp.broadcast_to(mean, (1, LANE))
        rstd_ref[...] = jnp.broadcast_to(rstd, (1, LANE))


def _gn_apply_kernel(x_ref, mean_ref, rstd_ref, w_ref, b_ref, o_ref):
    # x_ref/o_ref: (Cg, t_hw); mean/rstd: (1, 128); w/b: (Cg, 1)
    x = x_ref[...].astype(jnp.float32)
    mean = mean_ref[0:1, 0:1]
    rstd = rstd_ref[0:1, 0:1]
    w = w_ref[...].astype(jnp.float32)
    b = b_ref[...].astype(jnp.float32)
    o_ref[...] = ((x - mean) * rstd * w + b).astype(o_ref.dtype)


# ----------------------------- wrapper ---------------------------------------

def dynamic_group_norm_pallas(x, weight, bias, num_groups, eps=1e-5, *,
                              fused_block_cap_bytes=None,
                              two_pass_tile_bytes=None,
                              vmem_limit_bytes=None):
    """F.group_norm(x, num_groups, weight, bias, eps) forward on TPU.

    x: (N, C, H, W); weight/bias: (C,) already sliced to the active channels.
    """
    N, C, H, W = x.shape
    G = num_groups
    if C % G != 0:
        raise ValueError("num_channels must be divisible by num_groups")
    Cg = C // G
    HW = H * W
    S = Cg * HW
    eps = float(eps)

    if vmem_limit_bytes is None:
        vmem_limit_bytes = _default_vmem_limit_bytes()
    if fused_block_cap_bytes is None:
        fused_block_cap_bytes = max(512 * 1024, vmem_limit_bytes // 12)
    if two_pass_tile_bytes is None:
        two_pass_tile_bytes = max(1024 * 1024, fused_block_cap_bytes // 2)

    # metadata-only reshapes: no HBM copies, no padding of x
    x4 = x.reshape(N, G, Cg, HW)
    w4 = weight.reshape(G, Cg, 1)
    b4 = bias.reshape(G, Cg, 1)

    # f32 VMEM footprint of one (n, g) slab after (8, 128) tile padding
    slab_vmem = _round_up(Cg, SUBLANE) * _round_up(HW, LANE) * 4

    if slab_vmem <= fused_block_cap_bytes:
        # ----- fused single-pass path -----
        kN = max(1, min(N, fused_block_cap_bytes // slab_vmem))
        kG = 1
        if kN >= N:
            kN = N
            kG = max(1, min(G, fused_block_cap_bytes // (N * slab_vmem)))
        grid_g, grid_n = _cdiv(G, kG), _cdiv(N, kN)
        if grid_g * grid_n < 2:            # keep both v7x TensorCores busy
            if N >= 2:
                kN = _cdiv(N, 2)
                grid_n = _cdiv(N, kN)
            elif G >= 2:
                kG = _cdiv(G, 2)
                grid_g = _cdiv(G, kG)

        out4 = pl.pallas_call(
            functools.partial(_gn_fused_kernel, inv_count=1.0 / S, eps=eps),
            out_shape=jax.ShapeDtypeStruct((N, G, Cg, HW), x.dtype),
            grid_spec=pltpu.PrefetchScalarGridSpec(
                num_scalar_prefetch=0,
                grid=(grid_g, grid_n),     # group axis OUTER -> w/b resident
                in_specs=[
                    pl.BlockSpec((kN, kG, Cg, HW), lambda gb, nb: (nb, gb, 0, 0)),
                    pl.BlockSpec((kG, Cg, 1), lambda gb, nb: (gb, 0, 0)),
                    pl.BlockSpec((kG, Cg, 1), lambda gb, nb: (gb, 0, 0)),
                ],
                out_specs=pl.BlockSpec((kN, kG, Cg, HW),
                                       lambda gb, nb: (nb, gb, 0, 0)),
            ),
            compiler_params=pltpu.CompilerParams(
                dimension_semantics=("parallel", "parallel"),
                vmem_limit_bytes=vmem_limit_bytes),
        )(x4, w4, b4)
    else:
        # ----- VMEM-safe two-pass path for large slabs -----
        cg_pad = _round_up(Cg, SUBLANE)
        t_hw = (two_pass_tile_bytes // (cg_pad * 4)) // LANE * LANE
        t_hw = max(LANE, t_hw)
        t_hw = min(t_hw, _round_up(HW, LANE))
        n_hw = _cdiv(HW, t_hw)

        # Pass A: per-slab mean / rstd (spatial axis tiled, "arbitrary").
        mean, rstd = pl.pallas_call(
            functools.partial(
                _gn_stats_kernel, hw=HW, inv_count=1.0 / S,
                inv_first_count=1.0 / (Cg * min(t_hw, HW)), eps=eps),
            out_shape=(jax.ShapeDtypeStruct((N, G, 1, LANE), jnp.float32),
                       jax.ShapeDtypeStruct((N, G, 1, LANE), jnp.float32)),
            grid_spec=pltpu.PrefetchScalarGridSpec(
                num_scalar_prefetch=0,
                grid=(N, G, n_hw),
                in_specs=[pl.BlockSpec((None, None, Cg, t_hw),
                                       lambda n, g, r: (n, g, 0, r))],
                out_specs=[pl.BlockSpec((None, None, 1, LANE),
                                        lambda n, g, r: (n, g, 0, 0)),
                           pl.BlockSpec((None, None, 1, LANE),
                                        lambda n, g, r: (n, g, 0, 0))],
                scratch_shapes=[pltpu.VMEM((1, 1), jnp.float32),
                                pltpu.VMEM((SUBLANE, t_hw), jnp.float32),
                                pltpu.VMEM((SUBLANE, t_hw), jnp.float32)],
            ),
            compiler_params=pltpu.CompilerParams(
                dimension_semantics=("parallel", "parallel", "arbitrary"),
                vmem_limit_bytes=vmem_limit_bytes),
        )(x4)

        # Pass B: normalize + affine; mean/rstd/w/b are tiny resident blocks.
        out4 = pl.pallas_call(
            _gn_apply_kernel,
            out_shape=jax.ShapeDtypeStruct((N, G, Cg, HW), x.dtype),
            grid_spec=pltpu.PrefetchScalarGridSpec(
                num_scalar_prefetch=0,
                grid=(N, G, n_hw),
                in_specs=[
                    pl.BlockSpec((None, None, Cg, t_hw),
                                 lambda n, g, r: (n, g, 0, r)),
                    pl.BlockSpec((None, None, 1, LANE),
                                 lambda n, g, r: (n, g, 0, 0)),
                    pl.BlockSpec((None, None, 1, LANE),
                                 lambda n, g, r: (n, g, 0, 0)),
                    pl.BlockSpec((None, Cg, 1), lambda n, g, r: (g, 0, 0)),
                    pl.BlockSpec((None, Cg, 1), lambda n, g, r: (g, 0, 0)),
                ],
                out_specs=pl.BlockSpec((None, None, Cg, t_hw),
                                       lambda n, g, r: (n, g, 0, r)),
            ),
            compiler_params=pltpu.CompilerParams(
                dimension_semantics=("parallel", "parallel", "parallel"),
                vmem_limit_bytes=vmem_limit_bytes),
        )(x4, mean, rstd, w4, b4)

    return out4.reshape(N, C, H, W)


# ----------------------------- module wrapper --------------------------------

class DynamicGroupNormJax:
    """JAX port of poa.layers.dynamic_ops.DynamicGroupNorm (forward only)."""

    def __init__(self, num_groups, max_num_channels, mode, eps=1e-5, affine=True,
                 dtype=jnp.float32):
        if max_num_channels % num_groups != 0:
            raise ValueError("num_channels must be divisible by num_groups")
        self.num_groups = num_groups
        self.max_num_channels = max_num_channels
        self.eps = eps
        self.affine = affine
        self.mode = mode
        if self.affine:
            # reset_parameters(): ones / zeros (matches PyTorch init)
            self.weight = jnp.ones((max_num_channels,), dtype=dtype)
            self.bias = jnp.zeros((max_num_channels,), dtype=dtype)
        else:
            self.weight = None
            self.bias = None
        self.idx_in = max_num_channels

    def set_index(self, idx_in):
        self.idx_in = idx_in

    def get_active_weight_bias(self, num_active_channels):
        if not self.affine:
            # group_norm without affine == affine with weight=1, bias=0
            return (jnp.ones((num_active_channels,), jnp.float32),
                    jnp.zeros((num_active_channels,), jnp.float32))
        if self.mode == "order":
            if self.idx_in == self.max_num_channels:
                return self.weight, self.bias
            return self.weight[: self.idx_in], self.bias[: self.idx_in]
        # NOTE: Python-level branching on idx; fine eagerly, not under jit
        # with a traced idx (matches the PyTorch module's eager semantics).
        idx = jnp.asarray(self.idx_in)
        if idx.ndim == 0 or idx.shape[0] == self.max_num_channels:
            return self.weight, self.bias
        return jnp.take(self.weight, idx), jnp.take(self.bias, idx)

    def __call__(self, x):
        w, b = self.get_active_weight_bias(x.shape[1])
        return dynamic_group_norm_pallas(x, w, b, self.num_groups, self.eps)


def group_norm_ref(x, num_groups, weight, bias, eps):
    """Pure-JAX reference replicating F.group_norm semantics."""
    N, C, H, W = x.shape
    G = num_groups
    xr = x.reshape(N, G, -1).astype(jnp.float32)
    mean = xr.mean(axis=-1, keepdims=True)
    var = ((xr - mean) ** 2).mean(axis=-1, keepdims=True)
    y = (xr - mean) / jnp.sqrt(var + eps)
    y = y.reshape(N, C, H, W)
    y = y * weight.reshape(1, C, 1, 1) + bias.reshape(1, C, 1, 1)
    return y.astype(x.dtype)


if __name__ == "__main__":
    key = jax.random.PRNGKey(0)
    k_w, k_b, k1, k2, k3, k4, k5 = jax.random.split(key, 7)
    TOL = dict(atol=1e-4, rtol=1e-4)

    # --- Case 1: module-level usage, dynamic channel slice (order mode) ------
    max_num_channels, num_groups, active_channels = 8, 2, 4
    N, H, W = 2, 16, 16
    layer = DynamicGroupNormJax(num_groups, max_num_channels, mode="order",
                                eps=1e-5, affine=True)
    layer.set_index(active_channels)
    layer.weight = jax.random.normal(k_w, (max_num_channels,), jnp.float32)
    layer.bias = jax.random.normal(k_b, (max_num_channels,), jnp.float32)

    x1 = jax.random.normal(k1, (N, active_channels, H, W), jnp.float32)
    out1 = jax.block_until_ready(layer(x1))
    w1, b1 = layer.get_active_weight_bias(active_channels)
    ref1 = group_norm_ref(x1, num_groups, w1, b1, layer.eps)
    assert out1.shape == x1.shape
    assert jnp.allclose(out1, ref1, **TOL), "case 1 mismatch"

    # --- Case 2: H*W not a multiple of 128 (ragged lanes, fused path) --------
    x2 = jax.random.normal(k2, (2, 4, 7, 7), jnp.float32)
    w2 = jax.random.normal(k_w, (4,), jnp.float32)
    b2 = jax.random.normal(k_b, (4,), jnp.float32)
    out2 = jax.block_until_ready(dynamic_group_norm_pallas(x2, w2, b2, 2, 1e-5))
    ref2 = group_norm_ref(x2, 2, w2, b2, 1e-5)
    assert jnp.allclose(out2, ref2, **TOL), "case 2 mismatch"

    # --- Case 3: forced two-pass path, Cg not multiple of 8, ragged HW tail --
    x3 = jax.random.normal(k3, (2, 8, 30, 30), jnp.float32) + 3.0
    w3 = jax.random.normal(k_w, (8,), jnp.float32)
    b3 = jax.random.normal(k_b, (8,), jnp.float32)
    out3 = jax.block_until_ready(
        dynamic_group_norm_pallas(x3, w3, b3, 2, 1e-5,
                                  fused_block_cap_bytes=1024,
                                  two_pass_tile_bytes=4096))
    ref3 = group_norm_ref(x3, 2, w3, b3, 1e-5)
    assert jnp.allclose(out3, ref3, **TOL), "case 3 mismatch"

    # --- Case 4: forced two-pass path, Cg multiple of 8 (vreg-chunked acc) ---
    x4 = jax.random.normal(k4, (1, 16, 24, 24), jnp.float32)
    w4_ = jax.random.normal(k_w, (16,), jnp.float32)
    b4_ = jax.random.normal(k_b, (16,), jnp.float32)
    out4 = jax.block_until_ready(
        dynamic_group_norm_pallas(x4, w4_, b4_, 2, 1e-5,
                                  fused_block_cap_bytes=1024,
                                  two_pass_tile_bytes=8192))
    ref4 = group_norm_ref(x4, 2, w4_, b4_, 1e-5)
    assert jnp.allclose(out4, ref4, **TOL), "case 4 mismatch"

    # --- Case 5: fused path with a ragged (cdiv) batch grid -------------------
    x5 = jax.random.normal(k5, (3, 4, 10, 10), jnp.float32)
    w5 = jax.random.normal(k_w, (4,), jnp.float32)
    b5 = jax.random.normal(k_b, (4,), jnp.float32)
    out5 = jax.block_until_ready(
        dynamic_group_norm_pallas(x5, w5, b5, 2, 1e-5,
                                  fused_block_cap_bytes=8192))
    ref5 = group_norm_ref(x5, 2, w5, b5, 1e-5)
    assert jnp.allclose(out5, ref5, **TOL), "case 5 mismatch"

    print("KERNEL_OK")
</pallas_src>

<mosaic_0001>
module attributes {stable_mosaic.version = 11 : i64} {
  func.func @_gn_fused_kernel(%arg0: i32, %arg1: i32, %arg2: memref<1x2x2x256xf32, #tpu.memory_space<vmem>>, %arg3: memref<2x2x1xf32, #tpu.memory_space<vmem>>, %arg4: memref<2x2x1xf32, #tpu.memory_space<vmem>>, %arg5: memref<1x2x2x256xf32, #tpu.memory_space<vmem>>) attributes {dimension_semantics = [#tpu.dimension_semantics<parallel>, #tpu.dimension_semantics<parallel>], iteration_bounds = array<i64: 1, 2>, scalar_prefetch = 0 : i64, scratch_operands = 0 : i64, tpu.core_type = #tpu.core_type<tc>, window_params = [{transform_indices = @transform_0, window_bounds = array<i64: 1, 2, 2, 256>}, {transform_indices = @transform_1, window_bounds = array<i64: 2, 2, 1>}, {transform_indices = @transform_2, window_bounds = array<i64: 2, 2, 1>}, {transform_indices = @transform_3, window_bounds = array<i64: 1, 2, 2, 256>}]} {
    %c0 = arith.constant 0 : index
    %c0_0 = arith.constant 0 : index
    %c0_1 = arith.constant 0 : index
    %c0_2 = arith.constant 0 : index
    %0 = vector.load %arg2[%c0, %c0_0, %c0_1, %c0_2] : memref<1x2x2x256xf32, #tpu.memory_space<vmem>>, vector<1x2x2x256xf32>
    %cst = arith.constant dense<0.000000e+00> : vector<1x2x256xf32>
    %1 = vector.multi_reduction <add>, %0, %cst [2] : vector<1x2x2x256xf32> to vector<1x2x256xf32>
    %2 = vector.shape_cast %1 : vector<1x2x256xf32> to vector<1x2x1x256xf32>
    %cst_3 = arith.constant dense<0.000000e+00> : vector<1x2x1xf32>
    %3 = vector.multi_reduction <add>, %2, %cst_3 [3] : vector<1x2x1x256xf32> to vector<1x2x1xf32>
    %4 = vector.shape_cast %3 : vector<1x2x1xf32> to vector<1x2x1x1xf32>
    %cst_4 = arith.constant 0.001953125 : f32
    %5 = vector.broadcast %cst_4 : f32 to vector<1x2x1x1xf32>
    %6 = arith.mulf %4, %5 : vector<1x2x1x1xf32>
    %7 = vector.broadcast %6 : vector<1x2x1x1xf32> to vector<1x2x2x256xf32>
    %8 = arith.subf %0, %7 : vector<1x2x2x256xf32>
    %9 = arith.mulf %8, %8 : vector<1x2x2x256xf32>
    %cst_5 = arith.constant dense<0.000000e+00> : vector<1x2x256xf32>
    %10 = vector.multi_reduction <add>, %9, %cst_5 [2] : vector<1x2x2x256xf32> to vector<1x2x256xf32>
    %11 = vector.shape_cast %10 : vector<1x2x256xf32> to vector<1x2x1x256xf32>
    %cst_6 = arith.constant dense<0.000000e+00> : vector<1x2x1xf32>
    %12 = vector.multi_reduction <add>, %11, %cst_6 [3] : vector<1x2x1x256xf32> to vector<1x2x1xf32>
    %13 = vector.shape_cast %12 : vector<1x2x1xf32> to vector<1x2x1x1xf32>
    %cst_7 = arith.constant 0.001953125 : f32
    %14 = vector.broadcast %cst_7 : f32 to vector<1x2x1x1xf32>
    %15 = arith.mulf %13, %14 : vector<1x2x1x1xf32>
    %cst_8 = arith.constant 9.99999974E-6 : f32
    %16 = vector.broadcast %cst_8 : f32 to vector<1x2x1x1xf32>
    %17 = arith.addf %15, %16 : vector<1x2x1x1xf32>
    %18 = math.rsqrt %17 : vector<1x2x1x1xf32>
    %c0_9 = arith.constant 0 : index
    %c0_10 = arith.constant 0 : index
    %c0_11 = arith.constant 0 : index
    %19 = vector.load %arg3[%c0_9, %c0_10, %c0_11] : memref<2x2x1xf32, #tpu.memory_space<vmem>>, vector<2x2x1xf32>
    %20 = vector.shape_cast %19 : vector<2x2x1xf32> to vector<1x2x2x1xf32>
    %c0_12 = arith.constant 0 : index
    %c0_13 = arith.constant 0 : index
    %c0_14 = arith.constant 0 : index
    %21 = vector.load %arg4[%c0_12, %c0_13, %c0_14] : memref<2x2x1xf32, #tpu.memory_space<vmem>>, vector<2x2x1xf32>
    %22 = vector.shape_cast %21 : vector<2x2x1xf32> to vector<1x2x2x1xf32>
    %23 = vector.broadcast %18 : vector<1x2x1x1xf32> to vector<1x2x2x256xf32>
    %24 = arith.mulf %8, %23 : vector<1x2x2x256xf32>
    %25 = vector.broadcast %20 : vector<1x2x2x1xf32> to vector<1x2x2x256xf32>
    %26 = arith.mulf %24, %25 : vector<1x2x2x256xf32>
    %27 = vector.broadcast %22 : vector<1x2x2x1xf32> to vector<1x2x2x256xf32>
    %28 = arith.addf %26, %27 : vector<1x2x2x256xf32>
    %c0_15 = arith.constant 0 : index
    %c0_16 = arith.constant 0 : index
    %c0_17 = arith.constant 0 : index
    %c0_18 = arith.constant 0 : index
    %29 = vector.load %arg5[%c0_15, %c0_16, %c0_17, %c0_18] : memref<1x2x2x256xf32, #tpu.memory_space<vmem>>, vector<1x2x2x256xf32>
    tpu.vector_store %arg5[%c0_15, %c0_16, %c0_17, %c0_18], %28 {strides = array<i32>} : memref<1x2x2x256xf32, #tpu.memory_space<vmem>>, vector<1x2x2x256xf32>,
    return
  }
  func.func @transform_0(%arg0: i32, %arg1: i32) -> (i32, i32, i32, i32) {
    %c0_i32 = arith.constant 0 : i32
    %c0_i32_0 = arith.constant 0 : i32
    %c0_i32_1 = arith.constant 0 : i32
    return %arg1, %arg0, %c0_i32, %c0_i32_0 : i32, i32, i32, i32
  }
  func.func @transform_1(%arg0: i32, %arg1: i32) -> (i32, i32, i32) {
    %c0_i32 = arith.constant 0 : i32
    %c0_i32_0 = arith.constant 0 : i32
    %c0_i32_1 = arith.constant 0 : i32
    return %arg0, %c0_i32, %c0_i32_0 : i32, i32, i32
  }
  func.func @transform_2(%arg0: i32, %arg1: i32) -> (i32, i32, i32) {
    %c0_i32 = arith.constant 0 : i32
    %c0_i32_0 = arith.constant 0 : i32
    %c0_i32_1 = arith.constant 0 : i32
    return %arg0, %c0_i32, %c0_i32_0 : i32, i32, i32
  }
  func.func @transform_3(%arg0: i32, %arg1: i32) -> (i32, i32, i32, i32) {
    %c0_i32 = arith.constant 0 : i32
    %c0_i32_0 = arith.constant 0 : i32
    %c0_i32_1 = arith.constant 0 : i32
    return %arg1, %arg0, %c0_i32, %c0_i32_0 : i32, i32, i32, i32
  }
}

</mosaic_0001>

<llo_original>
// kernel: tpu_custom_call.1
$region0: #{tpu_custom_call.1}
  #allocation0 [shape = 'u32[]', space=smem, size = 0x4, offset = 0x4, fixed_abs, tag = 'smem constant byte address 0x4 - core index']
  #allocation1 [shape = 'u32[144,128]{1,0:T(1,128)}', space=vmem, size = 0x12000, scoped, tag = 'internal scratch']
  %s0 = inlined_call_operand.hbm [shape: f32[2,2,2,256], index: 0, kind: input, shape index: {}]
  %s1 = inlined_call_operand.vmem [shape: f32[2,2,1], index: 1, kind: input, shape index: {}]
  %s2 = inlined_call_operand.vmem [shape: f32[2,2,1], index: 2, kind: input, shape index: {}]
  %s3 = inlined_call_operand.hbm [shape: f32[2,2,2,256], index: 3, kind: output, shape index: {}]
  %s4 = sld [smem:[#allocation0]]
  $region49: #{tpu_custom_call.1} parent=0
    _
  %s6 = ssub.s32 1, %s4
  %s7 = scalar_select 0, %s6, %s4
  $region1: #{tpu_custom_call.1} parent=0
    #allocation2 [shape = 'u8[8192]{0}', space=vmem, size = 0x2000, scoped, tag = 'input window, operand 0']
    #allocation3 [shape = 's32[2]{0}', space=sflag, size = 0x8, scoped, tag = 'scoped memory for tpu_custom_call.1']
    #allocation4 [shape = 's32[2]{0}', space=sflag, size = 0x8, scoped, tag = 'scoped memory for tpu_custom_call.1']
    #allocation5 [shape = 'u8[8192]{0}', space=vmem, size = 0x2000, scoped, tag = 'output window, operand 0']
    %8 = vsyncpa [#allocation3], 0
    %s9 = scalar_lea.sflag [#allocation3], 1
    %10 = vsyncpa %s9, 0
    %11 = vsyncpa [#allocation4], 0
    %s12 = scalar_lea.sflag [#allocation4], 1
    %13 = vsyncpa %s12, 0
    loop: start=0, step=1, limit=4
    $region2: #{tpu_custom_call.1} parent=1 // loop_pre_header
      _
    $region3: #{tpu_custom_call.1} parent=1 // loop_header
      %s15 = sphi 0, %s19
      %p16 = scmp.ge.s32.totalorder %s15, 4
      %s22 = sphi 0, %s34
      %s23 = sphi 0, %s30
      %s24 = sphi 0, %s22
      %s25 = sphi 0, %s23
      %s26 = sphi 0, %s24
      %s27 = sphi 0, %s25
      %s39 = sphi 0, %s41
      %s42 = sphi 0, %s39
      %s43 = sphi 0, %s42
      %s59 = sphi 0, %s43
      %s65 = sphi 0, %s67
      %s68 = sphi 0, %s65
      %s69 = sphi 0, %s68
      %s85 = sphi 0, %s69
      %s91 = sphi 0, %s93
      %s94 = sphi 0, %s91
      %s95 = sphi 0, %s94
      %s111 = sphi 0, %s95
      %s119 = sphi 0, %s121
      %s122 = sphi 0, %s119
      %s123 = sphi 0, %s122
      %s139 = sphi 0, %s123
    $region4: #{tpu_custom_call.1} parent=1 // loop_header_branch
      %18 = sbr.rel (%p16) target = $region8
    $region5: #{tpu_custom_call.1} parent=1 // loop_body
      %s20 = ssub.s32 %s15, 1
      %s21 = ssub.s32 %s15, 2
      %s28 = sadd.s32 1, %s23
      %p29 = scmp.ge.s32.totalorder %s28, 2
      %s30 = scalar_select %p29, 0, %s28
      %s31 = sadd.s32 1, %s22
      %s32 = scalar_select %p29, %s31, %s22
      %p33 = scmp.ge.s32.totalorder %s32, 1
      %s34 = scalar_select %p33, 0, %s32
      %s35 = ssub.s32 %s23, %s30
      %s36 = ssub.s32 %s22, %s34
      %s37 = sor.u32 %s35, %s36
      %p38 = scmp.eq.s32.totalorder %s37, 0
      %s40 = sadd.s32 %s39, 1
      %s41 = scalar_select %p38, %s39, %s40
      %p44 = pneg %p38
      %p45 = scmp.eq.s32.totalorder %s15, 1
      %p46 = por %p44, %p45
      %p47 = scmp.ne.s32.totalorder %s39, %s42
      %p48 = scmp.eq.s32.totalorder %s15, 0
      %p49 = por %p47, %p48
      %p50 = scmp.ne.s32.totalorder %s39, %s42
      %p51 = scmp.eq.s32.totalorder %s20, 1
      %p52 = por %p50, %p51
      %p53 = scmp.ne.s32.totalorder %s42, %s43
      %p54 = scmp.eq.s32.totalorder %s20, 0
      %p55 = por %p53, %p54
      %p56 = scmp.ne.s32.totalorder %s42, %s43
      %p57 = scmp.eq.s32.totalorder %s21, 1
      %p58 = por %p56, %p57
      %p60 = scmp.ne.s32.totalorder %s43, %s59
      %p61 = scmp.eq.s32.totalorder %s21, 0
      %p62 = por %p60, %p61
      %s63 = ssub.s32 %s22, %s34
      %p64 = scmp.eq.s32.totalorder %s63, 0
      %s66 = sadd.s32 %s65, 1
      %s67 = scalar_select %p64, %s65, %s66
      %p70 = pneg %p64
      %p71 = scmp.eq.s32.totalorder %s15, 1
      %p72 = por %p70, %p71
      %p73 = scmp.ne.s32.totalorder %s65, %s68
      %p74 = scmp.eq.s32.totalorder %s15, 0
      %p75 = por %p73, %p74
      %p76 = scmp.ne.s32.totalorder %s65, %s68
      %p77 = scmp.eq.s32.totalorder %s20, 1
      %p78 = por %p76, %p77
      %p79 = scmp.ne.s32.totalorder %s68, %s69
      %p80 = scmp.eq.s32.totalorder %s20, 0
      %p81 = por %p79, %p80
      %p82 = scmp.ne.s32.totalorder %s68, %s69
      %p83 = scmp.eq.s32.totalorder %s21, 1
      %p84 = por %p82, %p83
      %p86 = scmp.ne.s32.totalorder %s69, %s85
      %p87 = scmp.eq.s32.totalorder %s21, 0
      %p88 = por %p86, %p87
      %s89 = ssub.s32 %s22, %s34
      %p90 = scmp.eq.s32.totalorder %s89, 0
      %s92 = sadd.s32 %s91, 1
      %s93 = scalar_select %p90, %s91, %s92
      %p96 = pneg %p90
      %p97 = scmp.eq.s32.totalorder %s15, 1
      %p98 = por %p96, %p97
      %p99 = scmp.ne.s32.totalorder %s91, %s94
      %p100 = scmp.eq.s32.totalorder %s15, 0
      %p101 = por %p99, %p100
      %p102 = scmp.ne.s32.totalorder %s91, %s94
      %p103 = scmp.eq.s32.totalorder %s20, 1
      %p104 = por %p102, %p103
      %p105 = scmp.ne.s32.totalorder %s94, %s95
      %p106 = scmp.eq.s32.totalorder %s20, 0
      %p107 = por %p105, %p106
      %p108 = scmp.ne.s32.totalorder %s94, %s95
      %p109 = scmp.eq.s32.totalorder %s21, 1
      %p110 = por %p108, %p109
      %p112 = scmp.ne.s32.totalorder %s95, %s111
      %p113 = scmp.eq.s32.totalorder %s21, 0
      %p114 = por %p112, %p113
      %s115 = ssub.s32 %s23, %s30
      %s116 = ssub.s32 %s22, %s34
      %s117 = sor.u32 %s115, %s116
      %p118 = scmp.eq.s32.totalorder %s117, 0
      %s120 = sadd.s32 %s119, 1
      %s121 = scalar_select %p118, %s119, %s120
      %p124 = pneg %p118
      %p125 = scmp.eq.s32.totalorder %s15, 1
      %p126 = por %p124, %p125
      %p127 = scmp.ne.s32.totalorder %s119, %s122
      %p128 = scmp.eq.s32.totalorder %s15, 0
      %p129 = por %p127, %p128
      %p130 = scmp.ne.s32.totalorder %s119, %s122
      %p131 = scmp.eq.s32.totalorder %s20, 1
      %p132 = por %p130, %p131
      %p133 = scmp.ne.s32.totalorder %s122, %s123
      %p134 = scmp.eq.s32.totalorder %s20, 0
      %p135 = por %p133, %p134
      %p136 = scmp.ne.s32.totalorder %s122, %s123
      %p137 = scmp.eq.s32.totalorder %s21, 1
      %p138 = por %p136, %p137
      %p140 = scmp.ne.s32.totalorder %s123, %s139
      %p141 = scmp.eq.s32.totalorder %s21, 0
      %p142 = por %p140, %p141
      %p143 = scmp.le.s32.totalorder 1, %s15
      %p144 = scmp.lt.s32.totalorder %s15, 3
      %p145 = pnand %p143, %p144
      %p146 = pneg %p145
      // Predicated region
      $region9: #{tpu_custom_call.1} parent=5 // pred_check
        _
      $region10: #{tpu_custom_call.1} parent=5 // pred_check_branch
        %148 = sbr.rel (%p145) target = $region12
      $region11: #{tpu_custom_call.1} parent=5 // pred_region
        %s149 = ssub.s32 %s15, 1
        // Predicated region
        $region13: #{tpu_custom_call.1} parent=11 // pred_check
          %p150 = pneg %p81
        $region14: #{tpu_custom_call.1} parent=11 // pred_check_branch
          %152 = sbr.rel (%p150) target = $region16
        $region15: #{tpu_custom_call.1} parent=11 // pred_region
          %s153 = smul.u32 2, %s24
          %p154 = scmp.lt.s32.totalorder %s153, 1
          %s155 = scalar_select %p154, %s153, 1
          %s156 = smul.addr %s155, 2
          %s157 = scalar_lea.vmem %s1, %s156
          %s158 = smul.u32 2, %s24
        $region16: #{tpu_custom_call.1} parent=11 // pred_fallthru
          _
        // Predicated region
        $region17: #{tpu_custom_call.1} parent=11 // pred_check
          %p159 = pneg %p107
        $region18: #{tpu_custom_call.1} parent=11 // pred_check_branch
          %161 = sbr.rel (%p159) target = $region20
        $region19: #{tpu_custom_call.1} parent=11 // pred_region
          %s162 = smul.u32 2, %s24
          %p163 = scmp.lt.s32.totalorder %s162, 1
          %s164 = scalar_select %p163, %s162, 1
          %s165 = smul.addr %s164, 2
          %s166 = scalar_lea.vmem %s2, %s165
          %s167 = smul.u32 2, %s24
        $region20: #{tpu_custom_call.1} parent=11 // pred_fallthru
          _
      $region12: #{tpu_custom_call.1} parent=5 // pred_fallthru
        _
      %p168 = scmp.lt.s32.totalorder %s15, 2
      // Predicated region
      $region21: #{tpu_custom_call.1} parent=5 // pred_check
        %p169 = pneg %p168
      $region22: #{tpu_custom_call.1} parent=5 // pred_check_branch
        %171 = sbr.rel (%p169) target = $region24
      $region23: #{tpu_custom_call.1} parent=5 // pred_region
        // Predicated region
        $region25: #{tpu_custom_call.1} parent=23 // pred_check
          %p172 = pneg %p49
        $region26: #{tpu_custom_call.1} parent=23 // pred_check_branch
          %174 = sbr.rel (%p172) target = $region28
        $region27: #{tpu_custom_call.1} parent=23 // pred_region
          %s175 = sand.u32 %s39, 1
          %s176 = scalar_lea.sflag [#allocation3], %s175
          %s177 = sand.u32 %s39, 1
          %s178 = smul.addr %s177, 8
          %s179 = scalar_lea.vmem [#allocation2], %s178
          %s180 = smul.u32 2, %s22
          %s182 = ssub.s32 128, 128
          %183 = vsyncadd %s176, %s182
          %s184 = smul.addr %s180, 2
          %s185 = smul.addr %s23, 4
          %s186 = sadd.s32 %s184, %s185
          %s187 = smul.addr %s186, 32
          %s188 = scalar_lea.hbm %s0, %s187
          %s189 = sshll.u32 %s179, 4
          %s190 = int_to_ptr.vmem [resolvable:$true] %s189
          %195 = dma.hbm_to_vmem [thread:$0]  %s188, 128, %s190, %s176, 64, 64, 4
        $region28: #{tpu_custom_call.1} parent=23 // pred_fallthru
          _
      $region24: #{tpu_custom_call.1} parent=5 // pred_fallthru
        _
      %p196 = scmp.le.s32.totalorder 1, %s15
      %p197 = scmp.lt.s32.totalorder %s15, 3
      %p198 = pnand %p196, %p197
      %p199 = pneg %p198
      // Predicated region
      $region29: #{tpu_custom_call.1} parent=5 // pred_check
        _
      $region30: #{tpu_custom_call.1} parent=5 // pred_check_branch
        %201 = sbr.rel (%p198) target = $region32
      $region31: #{tpu_custom_call.1} parent=5 // pred_region
        %s202 = ssub.s32 %s15, 1
        %s203 = sand.u32 %s42, 1
        %s204 = scalar_lea.sflag [#allocation3], %s203
        %s205 = sand.u32 %s42, 1
        %s206 = smul.addr %s205, 8
        %s207 = scalar_lea.vmem [#allocation2], %s206
        // Predicated region
        $region33: #{tpu_custom_call.1} parent=31 // pred_check
          %p208 = pneg %p55
        $region34: #{tpu_custom_call.1} parent=31 // pred_check_branch
          %210 = sbr.rel (%p208) target = $region36
        $region35: #{tpu_custom_call.1} parent=31 // pred_region
          %211 = dma.done %s204, 128
        $region36: #{tpu_custom_call.1} parent=31 // pred_fallthru
          _
        %s212 = sand.u32 %s42, 1
        %s213 = scalar_lea.sflag [#allocation3], %s212
        %s214 = sand.u32 %s42, 1
        %s215 = smul.addr %s214, 8
        %s216 = scalar_lea.vmem [#allocation2], %s215
        %p217 = pneg %p55
        %p218 = pneg %p52
        %s219 = smul.u32 2, %s24
        %p220 = scmp.lt.s32.totalorder %s219, 1
        %s221 = scalar_select %p220, %s219, 1
        %s222 = smul.addr %s221, 2
        %s223 = scalar_lea.vmem %s1, %s222
        %p224 = pneg %p81
        %p225 = pneg %p78
        %s226 = smul.u32 2, %s24
        %p227 = scmp.lt.s32.totalorder %s226, 1
        %s228 = scalar_select %p227, %s226, 1
        %s229 = smul.addr %s228, 2
        %s230 = scalar_lea.vmem %s2, %s229
        %p231 = pneg %p107
        %p232 = pneg %p104
        %p233 = pneg %p135
        %p234 = pneg %p132
        %s235 = sand.u32 %s122, 1
        %s236 = scalar_lea.sflag [#allocation4], %s235
        %s237 = sand.u32 %s122, 1
        %s238 = smul.addr %s237, 8
        %s239 = scalar_lea.vmem [#allocation5], %s238
        %s240 = smul.u32 2, %s24
        %s241 = smul.u32 2, %s24
        %p242 = scmp.lt.s32.totalorder %s241, 1
        %s243 = scalar_select %p242, %s241, 1
        %s244 = smul.addr %s243, 2
        %s245 = scalar_lea.vmem %s1, %s244
        %s246 = smul.u32 2, %s24
        %s247 = smul.u32 2, %s24
        %p248 = scmp.lt.s32.totalorder %s247, 1
        %s249 = scalar_select %p248, %s247, 1
        %s250 = smul.addr %s249, 2
        %s251 = scalar_lea.vmem %s2, %s250
        %s252 = smul.u32 2, %s24
        %s253 = smul.u32 2, %s24
        %v254 = vld [vmem:[%s207] sm:$0xf]
        %v255 = vld [vmem:[%s207 + $0x4] sm:$0xf]
        %v259 = vunpack.c.l.s4 1983009808
        %v260 = vunpack.c.0.s8 %v259
        %v261 = vlaneseq
        %v262 = vshrl.u32 %v261, 7
        %v263 = vsub.s32 %v260, %v262
        %v264 = vrot.slane %v254, %v263
        %v265 = vcombine.high %v264, %v264
        %v267 = vunpack.c.l.s4 1983009808
        %v268 = vunpack.c.0.s8 %v267
        %v269 = vlaneseq
        %v270 = vshrl.u32 %v269, 7
        %v271 = vsub.s32 %v268, %v270
        %v272 = vrot.slane %v255, %v271
        %v273 = vcombine.high %v272, %v272
        %vm278 = vcmask 1041408
        %v279 = vsel %vm278, %v264, 0.0
        %v280 = vrot.slane %v279, 4
        %v281 = vadd.f32 %v279, %v280
        %v282 = vrot.slane %v281, 2
        %v283 = vadd.f32 %v281, %v282
        %v284 = vrot.slane %v283, 1
        %v285 = vadd.f32 %v283, %v284
        %v286 = vsel %vm278, %v265, 0.0
        %v287 = vrot.slane %v286, 4
        %v288 = vadd.f32 %v286, %v287
        %v289 = vrot.slane %v288, 2
        %v290 = vadd.f32 %v288, %v289
        %v291 = vrot.slane %v290, 1
        %v292 = vadd.f32 %v290, %v291
        %v293 = vsel %vm278, %v272, 0.0
        %v294 = vrot.slane %v293, 4
        %v295 = vadd.f32 %v293, %v294
        %v296 = vrot.slane %v295, 2
        %v297 = vadd.f32 %v295, %v296
        %v298 = vrot.slane %v297, 1
        %v299 = vadd.f32 %v297, %v298
        %v300 = vsel %vm278, %v273, 0.0
        %v301 = vrot.slane %v300, 4
        %v302 = vadd.f32 %v300, %v301
        %v303 = vrot.slane %v302, 2
        %v304 = vadd.f32 %v302, %v303
        %v305 = vrot.slane %v304, 1
        %v306 = vadd.f32 %v304, %v305
        %v307 = vadd.f32 %v285, %v292
        %308 = vadd.xlane.f32.xlu0 %v307
        %v309 = vpop.xlane.xlu0 %308
        %v310 = vadd.f32 %v299, %v306
        %311 = vadd.xlane.f32.xlu0 %v310
        %v312 = vpop.xlane.xlu0 %311
        %v313 = vmul.f32 %v309, 0.001953125
        %v314 = vmul.f32 %v312, 0.001953125
        %v315 = vsub.f32 %v254, %v313
        %v316 = vsub.f32 %v255, %v314
        %v317 = vmul.f32 %v315, %v315
        %v318 = vmul.f32 %v316, %v316
        %v322 = vunpack.c.l.s4 1983009808
        %v323 = vunpack.c.0.s8 %v322
        %v324 = vlaneseq
        %v325 = vshrl.u32 %v324, 7
        %v326 = vsub.s32 %v323, %v325
        %v327 = vrot.slane %v317, %v326
        %v328 = vcombine.high %v327, %v327
        %v330 = vunpack.c.l.s4 1983009808
        %v331 = vunpack.c.0.s8 %v330
        %v332 = vlaneseq
        %v333 = vshrl.u32 %v332, 7
        %v334 = vsub.s32 %v331, %v333
        %v335 = vrot.slane %v318, %v334
        %v336 = vcombine.high %v335, %v335
        %v341 = vsel %vm278, %v327, 0.0
        %v342 = vrot.slane %v341, 4
        %v343 = vadd.f32 %v341, %v342
        %v344 = vrot.slane %v343, 2
        %v345 = vadd.f32 %v343, %v344
        %v346 = vrot.slane %v345, 1
        %v347 = vadd.f32 %v345, %v346
        %v348 = vsel %vm278, %v328, 0.0
        %v349 = vrot.slane %v348, 4
        %v350 = vadd.f32 %v348, %v349
        %v351 = vrot.slane %v350, 2
        %v352 = vadd.f32 %v350, %v351
        %v353 = vrot.slane %v352, 1
        %v354 = vadd.f32 %v352, %v353
        %v355 = vsel %vm278, %v335, 0.0
        %v356 = vrot.slane %v355, 4
        %v357 = vadd.f32 %v355, %v356
        %v358 = vrot.slane %v357, 2
        %v359 = vadd.f32 %v357, %v358
        %v360 = vrot.slane %v359, 1
        %v361 = vadd.f32 %v359, %v360
        %v362 = vsel %vm278, %v336, 0.0
        %v363 = vrot.slane %v362, 4
        %v364 = vadd.f32 %v362, %v363
        %v365 = vrot.slane %v364, 2
        %v366 = vadd.f32 %v364, %v365
        %v367 = vrot.slane %v366, 1
        %v368 = vadd.f32 %v366, %v367
        %v369 = vadd.f32 %v347, %v354
        %370 = vadd.xlane.f32.xlu0 %v369
        %v371 = vpop.xlane.xlu0 %370
        %v372 = vadd.f32 %v361, %v368
        %373 = vadd.xlane.f32.xlu0 %v372
        %v374 = vpop.xlane.xlu0 %373
        %v375 = vmul.f32 %v371, 0.001953125
        %v376 = vmul.f32 %v374, 0.001953125
        %v377 = vadd.f32 %v375, 1e-05
        %v378 = vadd.f32 %v376, 1e-05
        %v379 = vrsqrt.pop %v377
        %v380 = vrsqrt.pop %v378
        %v381 = vld [vmem:[%s245] sm:$0x3]
        %v382 = vld [vmem:[%s245 + $0x2] sm:$0x3]
        %v383 = vld [vmem:[%s251] sm:$0x3]
        %v384 = vld [vmem:[%s251 + $0x2] sm:$0x3]
        %v385 = vmul.f32 %v315, %v379
        %v386 = vmul.f32 %v316, %v380
        %388 = vset.pattern.permute.xlu0 0
        %389 = vperm.xlu0 %388, %v381
        %v390 = vpop.permute.xlu0 %389
        %392 = vset.pattern.permute.xlu0 0
        %393 = vperm.xlu0 %392, %v382
        %v394 = vpop.permute.xlu0 %393
        %v396 = vunpack.c.l.s4 269488144
        %v397 = vunpack.c.0.s8 %v396
        %v398 = vlaneseq
        %v399 = vshrl.u32 %v398, 7
        %v400 = vsub.s32 %v397, %v399
        %v401 = vrot.slane %v390, %v400
        %v403 = vunpack.c.l.s4 269488144
        %v404 = vunpack.c.0.s8 %v403
        %v405 = vlaneseq
        %v406 = vshrl.u32 %v405, 7
        %v407 = vsub.s32 %v404, %v406
        %v408 = vrot.slane %v394, %v407
        %v411 = vmul.f32 %v385, %v401
        %v412 = vmul.f32 %v386, %v408
        %414 = vset.pattern.permute.xlu0 0
        %415 = vperm.xlu0 %414, %v383
        %v416 = vpop.permute.xlu0 %415
        %418 = vset.pattern.permute.xlu0 0
        %419 = vperm.xlu0 %418, %v384
        %v420 = vpop.permute.xlu0 %419
        %v422 = vunpack.c.l.s4 269488144
        %v423 = vunpack.c.0.s8 %v422
        %v424 = vlaneseq
        %v425 = vshrl.u32 %v424, 7
        %v426 = vsub.s32 %v423, %v425
        %v427 = vrot.slane %v416, %v426
        %v429 = vunpack.c.l.s4 269488144
        %v430 = vunpack.c.0.s8 %v429
        %v431 = vlaneseq
        %v432 = vshrl.u32 %v431, 7
        %v433 = vsub.s32 %v430, %v432
        %v434 = vrot.slane %v420, %v433
        %v437 = vadd.f32 %v411, %v427
        %v438 = vadd.f32 %v412, %v434
        %439 = vst [vmem:[%s239] sm:$0xf] %v437
        %440 = vst [vmem:[%s239 + $0x4] sm:$0xf] %v438
        %s441 = sand.u32 %s122, 1
        %s442 = scalar_lea.sflag [#allocation4], %s441
        %s443 = sand.u32 %s122, 1
        %s444 = smul.addr %s443, 8
        %s445 = scalar_lea.vmem [#allocation5], %s444
        // Predicated region
        $region37: #{tpu_custom_call.1} parent=31 // pred_check
          %p446 = pneg %p132
        $region38: #{tpu_custom_call.1} parent=31 // pred_check_branch
          %448 = sbr.rel (%p446) target = $region40
        $region39: #{tpu_custom_call.1} parent=31 // pred_region
          %s449 = smul.u32 2, %s24
          %s451 = ssub.s32 128, 128
          %452 = vsyncadd %s442, %s451
          %s453 = smul.addr %s449, 2
          %s454 = smul.addr %s25, 4
          %s455 = sadd.s32 %s453, %s454
          %s456 = smul.addr %s455, 32
          %s457 = scalar_lea.hbm %s3, %s456
          %s458 = sshll.u32 %s445, 4
          %s459 = int_to_ptr.vmem [resolvable:$true] %s458
          %464 = dma.vmem_to_hbm [thread:$0]  %s459, 128, %s457, %s442, 64, 64, 4
        $region40: #{tpu_custom_call.1} parent=31 // pred_fallthru
          _
      $region32: #{tpu_custom_call.1} parent=5 // pred_fallthru
        _
      %p465 = scmp.le.s32.totalorder 2, %s15
      // Predicated region
      $region41: #{tpu_custom_call.1} parent=5 // pred_check
        %p466 = pneg %p465
      $region42: #{tpu_custom_call.1} parent=5 // pred_check_branch
        %468 = sbr.rel (%p466) target = $region44
      $region43: #{tpu_custom_call.1} parent=5 // pred_region
        %s469 = ssub.s32 %s15, 2
        // Predicated region
        $region45: #{tpu_custom_call.1} parent=43 // pred_check
          %p470 = pneg %p138
        $region46: #{tpu_custom_call.1} parent=43 // pred_check_branch
          %472 = sbr.rel (%p470) target = $region48
        $region47: #{tpu_custom_call.1} parent=43 // pred_region
          %s473 = sand.u32 %s123, 1
          %s474 = scalar_lea.sflag [#allocation4], %s473
          %s475 = sand.u32 %s123, 1
          %s476 = smul.addr %s475, 8
          %s477 = scalar_lea.vmem [#allocation5], %s476
          %478 = dma.done %s474, 128
        $region48: #{tpu_custom_call.1} parent=43 // pred_fallthru
          _
      $region44: #{tpu_custom_call.1} parent=5 // pred_fallthru
        _
    $region6: #{tpu_custom_call.1} parent=1 // loop_footer
      %s19 = sadd.s32 1, %s15
    $region7: #{tpu_custom_call.1} parent=1 // loop_footer_branch
      %14 = sbr.rel target = $region3
    $region8: #{tpu_custom_call.1} parent=1 // loop_exit
      _
    %479 = vsyncpa [#allocation3], 1
    %s480 = scalar_lea.sflag [#allocation3], 1
    %481 = vsyncpa %s480, 1
    %482 = vsyncpa [#allocation4], 1
    %s483 = scalar_lea.sflag [#allocation4], 1
    %484 = vsyncpa %s483, 1

</llo_original>
